<compile_context>
chip_gen: v7x
topology: tpu7x:2x2x1
jax: 0.10.0
libtpu: 0.0.40
codegen_flags: <defaults>
</compile_context>

<pallas_src>
import jax
import jax.numpy as jnp
from jax import lax
from jax.experimental import pallas as pl
from jax.experimental.pallas import tpu as pltpu


# ----------------------------- configuration -------------------------------- #
PAIR_RES_REL = 32
PAIR_CHAIN_REL = 4
RES_VOCAB = PAIR_RES_REL * 2 + 1 + 1        # 66
CHAIN_VOCAB = PAIR_CHAIN_REL * 2 + 1 + 1    # 10
VOCAB = RES_VOCAB + CHAIN_VOCAB             # 76 -> merged two-hot width
C_RES = 8                                   # pair_res_channel
C_CHAIN = 8                                 # pair_chain_channel
C_FG_IN = 4                                 # masked_pair_map channels (no rbf / tri)
C_FG = 16                                   # pair_FG_channel
C_IN = C_RES + C_CHAIN + C_FG               # pair_input_channel = 32
C_OUT = 32                                  # pair_channel (== C_IN, see note above)

# Packed per-row feature columns (f32 stream in HBM):
#   0..3  : fg_hi (bf16-exact high part of masked_pair_map)
#   4..7  : fg_lo (residual; shares the same fused weight rows as fg_hi)
#   8     : pair_condition (0/1)
#   9     : res index            in [0, 66)
#   10    : chain index + 66     in [66, 76)
#   11    : 1.0 (bias lane; fused bias lives in the matching weight row)
#   12..15: 0.0 padding
FEAT_C = 16
K_ALL = FEAT_C + VOCAB                      # 92 -> merged LHS / fused weight K dim

SUB_M = 128       # in-kernel sub-chunk: hoisted iota = 16 vregs, live set stays in-file
MAX_TILE_M = 1024  # rows of the flattened B*L*L axis per grid step


def _round_up(x, m):
    return ((x + m - 1) // m) * m


# ------------------------------- Pallas kernel ------------------------------ #
def _pair_encoder_kernel(feat_ref, w_hi_ref, w_lo_ref, out_ref):
    """out[r] = bf16([feat[r] | two_hot(res[r], chain[r])]) @ (w_hi + w_lo), f32-accumulated.

    Embeddings, pair_FG linear, pair_input, bias and condition embedding are all pre-fused
    offline into the single (92, 32) table (split hi/lo for the bf16 MXU path), so the
    per-sub-chunk work is one one-hot build, one lane concat and two bf16 MXU matmuls.
    """
    tm = out_ref.shape[0]
    n_sub = tm // SUB_M                                  # static python int

    w_hi = w_hi_ref[...]                                 # (92, 32) bf16
    w_lo = w_lo_ref[...]                                 # (92, 32) bf16
    # Loop-invariant; hoisted because Mosaic will not CSE it out of the loop body.
    iot = lax.broadcasted_iota(jnp.int32, (SUB_M, VOCAB), 1)

    def body(s, carry):
        r0 = pl.multiple_of(s * SUB_M, SUB_M)
        blk = feat_ref[pl.ds(r0, SUB_M), :]                          # (SUB_M, 16) f32
        res = blk[:, 9:10].astype(jnp.int32)                         # (SUB_M, 1) in [0, 66)
        chn = blk[:, 10:11].astype(jnp.int32)                        # (SUB_M, 1) in [66, 76)
        two_hot = ((iot == res) | (iot == chn)).astype(jnp.float32)  # (SUB_M, 76)
        lhs = jnp.concatenate([blk, two_hot], axis=-1).astype(jnp.bfloat16)  # (SUB_M, 92)
        out = (jnp.dot(lhs, w_hi, preferred_element_type=jnp.float32)
               + jnp.dot(lhs, w_lo, preferred_element_type=jnp.float32))     # (SUB_M, 32)
        out_ref[pl.ds(r0, SUB_M), :] = out
        return carry

    lax.fori_loop(0, n_sub, body, 0, unroll=True)


# --------------------------- offline parameter fusion ------------------------ #
def _fuse_params(params):
    """Build the single fused weight table and split it into bf16 hi/lo parts.

    Row layout of w_all (92, 32), matching the packed LHS lanes:
      0..3   fused pair_FG path (for fg_hi)          4..7   same rows again (for fg_lo)
      8      condition delta (cond_emb[1]-cond_emb[0])
      9..10  zeros (raw index lanes, unused by the matmul)
      11     fused bias (b_fg@w_in_fg + b_in + cond_emb[0])   12..15 zeros
      16..81 res embedding @ w_in_res                82..91 chain embedding @ w_in_chain
    """
    hi = jax.lax.Precision.HIGHEST
    w_in = params['w_in']                                            # (C_IN, C_OUT)

    res_t = jnp.dot(params['res_emb'], w_in[0:C_RES], precision=hi)                  # (66, 32)
    chn_t = jnp.dot(params['chain_emb'], w_in[C_RES:C_RES + C_CHAIN], precision=hi)  # (10, 32)
    w_emb = jnp.concatenate([res_t, chn_t], axis=0)                                  # (76, 32)

    w_fg_f = jnp.dot(params['w_fg'], w_in[C_RES + C_CHAIN:C_IN], precision=hi)       # (4, 32)
    delta = params['cond_emb'][1:2] - params['cond_emb'][0:1]                        # (1, 32)
    b_all = (jnp.dot(params['b_fg'], w_in[C_RES + C_CHAIN:C_IN], precision=hi)
             + params['b_in'] + params['cond_emb'][0:1])                             # (1, 32)

    w_feat = jnp.concatenate([
        w_fg_f,                                         # rows 0..3   <- fg_hi
        w_fg_f,                                         # rows 4..7   <- fg_lo
        delta,                                          # row 8       <- pair_condition
        jnp.zeros((2, C_OUT), jnp.float32),             # rows 9..10  <- raw indices
        b_all,                                          # row 11      <- constant-1 bias lane
        jnp.zeros((FEAT_C - 12, C_OUT), jnp.float32),   # rows 12..15 <- padding
    ], axis=0)                                          # (16, 32)

    w_all = jnp.concatenate([w_feat, w_emb], axis=0).astype(jnp.float32)   # (92, 32)
    w_hi = w_all.astype(jnp.bfloat16)
    w_lo = (w_all - w_hi.astype(jnp.float32)).astype(jnp.bfloat16)
    return w_hi, w_lo


# --------------------------------- wrapper ----------------------------------- #
def pair_encoder_pallas(params, pair, pair_mask=None, geom_pair=None, condition=None):
    """Pallas forward. pair_mask is accepted but unused (matches the PyTorch forward)."""
    assert VOCAB < (1 << 24)  # indices round-trip through f32 lanes; exact for this vocab

    res_idx = pair['pair_res_rel']          # (B, L, L) int
    chain_idx = pair['pair_chain_rel']      # (B, L, L) int
    fg = pair['masked_pair_map'] if geom_pair is None else geom_pair  # (B, L, L, 4)

    B, L, _ = res_idx.shape
    M = B * L * L

    if condition is None:
        condition = jnp.zeros((B, L), dtype=jnp.int32)
    condition = condition.astype(jnp.int32)
    pair_condition = condition[:, :, None] * condition[:, None, :]    # (B, L, L) in {0, 1}

    # One packed f32 feature stream. fg is pre-split into a bf16-exact hi part and an f32
    # residual so the in-kernel bf16 LHS cast loses essentially nothing.
    fg_flat = fg.reshape(M, C_FG_IN).astype(jnp.float32)
    fg_hi = fg_flat.astype(jnp.bfloat16).astype(jnp.float32)
    fg_lo = fg_flat - fg_hi
    feat = jnp.concatenate([
        fg_hi,
        fg_lo,
        pair_condition.reshape(M, 1).astype(jnp.float32),
        res_idx.reshape(M, 1).astype(jnp.float32),
        (chain_idx + RES_VOCAB).reshape(M, 1).astype(jnp.float32),
        jnp.ones((M, 1), jnp.float32),                                # bias lane
        jnp.zeros((M, FEAT_C - 12), jnp.float32),
    ], axis=-1)                                                       # (M, 16)

    # >=2 grid steps whenever M allows (v7x megacore + DMA/compute overlap), capped at
    # 1024 rows/step (per-step overhead already amortized; no per-generation VMEM fork).
    tile_m = min(MAX_TILE_M, max(SUB_M, _round_up((M + 1) // 2, SUB_M)))
    m_pad = _round_up(M, tile_m)
    if m_pad != M:
        feat = jnp.pad(feat, ((0, m_pad - M), (0, 0)))                # padded rows discarded

    w_hi, w_lo = _fuse_params(params)

    cost = pl.CostEstimate(
        flops=2 * (2 * m_pad * K_ALL * C_OUT),                 # two bf16 matmuls, f32 acc
        transcendentals=0,
        bytes_accessed=m_pad * 4 * (FEAT_C + C_OUT) + 2 * K_ALL * C_OUT * 2)

    out_flat = pl.pallas_call(
        _pair_encoder_kernel,
        out_shape=jax.ShapeDtypeStruct((m_pad, C_OUT), jnp.float32),
        grid_spec=pltpu.PrefetchScalarGridSpec(
            num_scalar_prefetch=0,
            grid=(m_pad // tile_m,),
            in_specs=[
                pl.BlockSpec((tile_m, FEAT_C), lambda i: (i, 0)),   # packed row features
                pl.BlockSpec((K_ALL, C_OUT), lambda i: (0, 0)),     # fused weight, bf16 hi
                pl.BlockSpec((K_ALL, C_OUT), lambda i: (0, 0)),     # fused weight, bf16 lo
            ],
            out_specs=pl.BlockSpec((tile_m, C_OUT), lambda i: (i, 0)),
        ),
        compiler_params=pltpu.CompilerParams(
            dimension_semantics=("parallel",),
            vmem_limit_bytes=32 * 1024 * 1024),
        cost_estimate=cost,
    )(feat, w_hi, w_lo)

    return out_flat[:M].reshape(B, L, L, C_OUT)


# ------------------------------ pure-JAX reference --------------------------- #
def pair_encoder_reference(params, pair, pair_mask=None, geom_pair=None, condition=None):
    res_act = params['res_emb'][pair['pair_res_rel']]
    chain_act = params['chain_emb'][pair['pair_chain_rel']]
    fg = pair['masked_pair_map'] if geom_pair is None else geom_pair
    fg_act = fg @ params['w_fg'] + params['b_fg'][0]
    pair_act = jnp.concatenate([res_act, chain_act, fg_act], -1)
    x = pair_act @ params['w_in'] + params['b_in'][0]
    B, L = pair_act.shape[:2]
    if condition is None:
        condition = jnp.zeros((B, L), dtype=jnp.int32)
    condition = condition.astype(jnp.int32)
    pc = condition[:, :, None] * condition[:, None, :]
    return x + params['cond_emb'][pc]


# ----------------------------------- main ------------------------------------ #
def _make_params(key):
    ks = jax.random.split(key, 7)
    s = 0.05
    return {
        'res_emb':   s * jax.random.normal(ks[0], (RES_VOCAB, C_RES), jnp.float32),
        'chain_emb': s * jax.random.normal(ks[1], (CHAIN_VOCAB, C_CHAIN), jnp.float32),
        'w_fg':      s * jax.random.normal(ks[2], (C_FG_IN, C_FG), jnp.float32),
        'b_fg':      s * jax.random.normal(ks[3], (1, C_FG), jnp.float32),
        'w_in':      s * jax.random.normal(ks[4], (C_IN, C_OUT), jnp.float32),
        'b_in':      s * jax.random.normal(ks[5], (1, C_OUT), jnp.float32),
        'cond_emb':  s * jax.random.normal(ks[6], (2, C_OUT), jnp.float32),
    }


if __name__ == "__main__":
    key = jax.random.PRNGKey(0)
    k_par, k_res, k_chain, k_fg, k_cond = jax.random.split(key, 5)

    B, L = 2, 8
    params = _make_params(k_par)

    pair = {
        'pair_res_rel':   jax.random.randint(k_res, (B, L, L), 0, RES_VOCAB, jnp.int32),
        'pair_chain_rel': jax.random.randint(k_chain, (B, L, L), 0, CHAIN_VOCAB, jnp.int32),
        'masked_pair_map': jax.random.normal(k_fg, (B, L, L, C_FG_IN), jnp.float32),
    }
    pair_mask = jnp.ones((B, L, L), jnp.float32)   # unused by forward, kept for parity
    condition = jax.random.bernoulli(k_cond, 0.5, (B, L)).astype(jnp.int32)

    out = pair_encoder_pallas(params, pair, pair_mask, geom_pair=None, condition=condition)
    out = jax.block_until_ready(out)

    ref = pair_encoder_reference(params, pair, pair_mask, geom_pair=None, condition=condition)
    assert out.shape == (B, L, L, C_OUT)
    # Offline fusion reassociates f32 sums; the bf16 hi/lo weight split + bf16-exact LHS
    # keep the matmul itself at ~f32 accuracy, so 1e-4 still catches real indexing/fusion
    # bugs (signal magnitude ~3e-2, expected numerical error ~1e-6).
    assert jnp.allclose(out, ref, atol=1e-4, rtol=1e-4), "mismatch vs JAX reference"

    print("KERNEL_OK")
</pallas_src>

<mosaic_0001>
module attributes {stable_mosaic.version = 11 : i64} {
  func.func @_pair_encoder_kernel(%arg0: i32, %arg1: memref<128x16xf32, #tpu.memory_space<vmem>>, %arg2: memref<92x32xbf16, #tpu.memory_space<vmem>>, %arg3: memref<92x32xbf16, #tpu.memory_space<vmem>>, %arg4: memref<128x32xf32, #tpu.memory_space<vmem>>) attributes {dimension_semantics = [#tpu.dimension_semantics<parallel>], iteration_bounds = array<i64: 1>, scalar_prefetch = 0 : i64, scratch_operands = 0 : i64, tpu.core_type = #tpu.core_type<tc>, window_params = [{transform_indices = @transform_0, window_bounds = array<i64: 128, 16>}, {pipeline_mode = #tpu.pipeline_mode<synchronous>, transform_indices = @transform_1, window_bounds = array<i64: 92, 32>}, {pipeline_mode = #tpu.pipeline_mode<synchronous>, transform_indices = @transform_2, window_bounds = array<i64: 92, 32>}, {transform_indices = @transform_3, window_bounds = array<i64: 128, 32>}]} {
    %c0 = arith.constant 0 : index
    %c0_0 = arith.constant 0 : index
    %0 = vector.load %arg2[%c0, %c0_0] : memref<92x32xbf16, #tpu.memory_space<vmem>>, vector<92x32xbf16>
    %c0_1 = arith.constant 0 : index
    %c0_2 = arith.constant 0 : index
    %1 = vector.load %arg3[%c0_1, %c0_2] : memref<92x32xbf16, #tpu.memory_space<vmem>>, vector<92x32xbf16>
    %2 = tpu.iota {dimensions = array<i32: 1>} : vector<128x76xi32>
    %c0_i32 = arith.constant 0 : i32
    %c128_i32 = arith.constant 128 : i32
    %3 = arith.muli %c0_i32, %c128_i32 : i32
    %4 = tpu.assume_multiple %3, 128 : i32
    %5 = arith.index_cast %4 : i32 to index
    %c0_3 = arith.constant 0 : index
    %6 = vector.load %arg1[%5, %c0_3] : memref<128x16xf32, #tpu.memory_space<vmem>>, vector<128x16xf32>
    %7 = vector.extract_strided_slice %6 {offsets = [0, 9], sizes = [128, 1], strides = [1, 1]} : vector<128x16xf32> to vector<128x1xf32>
    %8 = arith.fptosi %7 : vector<128x1xf32> to vector<128x1xi32>
    %9 = vector.extract_strided_slice %6 {offsets = [0, 10], sizes = [128, 1], strides = [1, 1]} : vector<128x16xf32> to vector<128x1xf32>
    %10 = arith.fptosi %9 : vector<128x1xf32> to vector<128x1xi32>
    %11 = vector.broadcast %8 : vector<128x1xi32> to vector<128x76xi32>
    %12 = arith.cmpi eq, %2, %11 : vector<128x76xi32>
    %13 = vector.broadcast %10 : vector<128x1xi32> to vector<128x76xi32>
    %14 = arith.cmpi eq, %2, %13 : vector<128x76xi32>
    %15 = arith.ori %12, %14 : vector<128x76xi1>
    %16 = arith.extui %15 : vector<128x76xi1> to vector<128x76xi32>
    %17 = arith.sitofp %16 : vector<128x76xi32> to vector<128x76xf32>
    %18 = tpu.concatenate %6, %17 in 1 : vector<128x16xf32>, vector<128x76xf32> -> vector<128x92xf32>
    %19 = arith.truncf %18 : vector<128x92xf32> to vector<128x92xbf16>
    %cst = arith.constant dense<0.000000e+00> : vector<128x32xf32>
    %20 = tpu.matmul %19, %0, %cst {dimension_numbers = #tpu.dot_dimension_numbers<[1], [0], [0], [1], [0, 0, 1, 1], [], []>} : vector<128x92xbf16>, vector<92x32xbf16>, vector<128x32xf32> -> vector<128x32xf32>
    %cst_4 = arith.constant dense<0.000000e+00> : vector<128x32xf32>
    %21 = tpu.matmul %19, %1, %cst_4 {dimension_numbers = #tpu.dot_dimension_numbers<[1], [0], [0], [1], [0, 0, 1, 1], [], []>} : vector<128x92xbf16>, vector<92x32xbf16>, vector<128x32xf32> -> vector<128x32xf32>
    %22 = arith.addf %20, %21 : vector<128x32xf32>
    %23 = arith.index_cast %4 : i32 to index
    %c0_5 = arith.constant 0 : index
    %24 = vector.load %arg4[%23, %c0_5] : memref<128x32xf32, #tpu.memory_space<vmem>>, vector<128x32xf32>
    tpu.vector_store %arg4[%23, %c0_5], %22 {strides = array<i32>} : memref<128x32xf32, #tpu.memory_space<vmem>>, vector<128x32xf32>,
    %c1_i32 = arith.constant 1 : i32
    return
  }
  func.func @transform_0(%arg0: i32) -> (i32, i32) {
    %c0_i32 = arith.constant 0 : i32
    %c0_i32_0 = arith.constant 0 : i32
    return %arg0, %c0_i32 : i32, i32
  }
  func.func @transform_1(%arg0: i32) -> (i32, i32) {
    %c0_i32 = arith.constant 0 : i32
    %c0_i32_0 = arith.constant 0 : i32
    %c0_i32_1 = arith.constant 0 : i32
    return %c0_i32, %c0_i32_0 : i32, i32
  }
  func.func @transform_2(%arg0: i32) -> (i32, i32) {
    %c0_i32 = arith.constant 0 : i32
    %c0_i32_0 = arith.constant 0 : i32
    %c0_i32_1 = arith.constant 0 : i32
    return %c0_i32, %c0_i32_0 : i32, i32
  }
  func.func @transform_3(%arg0: i32) -> (i32, i32) {
    %c0_i32 = arith.constant 0 : i32
    %c0_i32_0 = arith.constant 0 : i32
    return %arg0, %c0_i32 : i32, i32
  }
}

</mosaic_0001>

<llo_original>
// kernel: tpu_custom_call.1
$region0: #{tpu_custom_call.1}
  #allocation0 [shape = 'u32[]', space=smem, size = 0x4, offset = 0x4, fixed_abs, tag = 'smem constant byte address 0x4 - core index']
  #allocation1 [shape = 'u32[144,128]{1,0:T(1,128)}', space=vmem, size = 0x12000, scoped, tag = 'internal scratch']
  %s0 = inlined_call_operand.vmem [shape: f32[128,16], index: 0, kind: input, shape index: {}]
  %s1 = inlined_call_operand.vmem [shape: bf16[92,32], index: 1, kind: input, shape index: {}]
  %s2 = inlined_call_operand.vmem [shape: bf16[92,32], index: 2, kind: input, shape index: {}]
  %s3 = inlined_call_operand.vmem [shape: f32[128,32], index: 3, kind: output, shape index: {}]
  %s4 = sld [smem:[#allocation0]]
  $region22: #{tpu_custom_call.1} parent=0
    _
  %s6 = ssub.s32 1, %s4
  %s7 = scalar_select 0, %s6, %s4
  // Predicated region
  $region2: #{tpu_custom_call.1} parent=0 // pred_check
    _
  $region3: #{tpu_custom_call.1} parent=0 // pred_check_branch
    %9 = sbr.rel (0) target = $region5
  $region4: #{tpu_custom_call.1} parent=0 // pred_region
    _
  $region5: #{tpu_custom_call.1} parent=0 // pred_fallthru
    _
  // Predicated region
  $region6: #{tpu_custom_call.1} parent=0 // pred_check
    _
  $region7: #{tpu_custom_call.1} parent=0 // pred_check_branch
    %11 = sbr.rel (0) target = $region9
  $region8: #{tpu_custom_call.1} parent=0 // pred_region
    _
  $region9: #{tpu_custom_call.1} parent=0 // pred_fallthru
    _
  // Predicated region
  $region10: #{tpu_custom_call.1} parent=0 // pred_check
    _
  $region11: #{tpu_custom_call.1} parent=0 // pred_check_branch
    %13 = sbr.rel (0) target = $region13
  $region12: #{tpu_custom_call.1} parent=0 // pred_region
    _
  $region13: #{tpu_custom_call.1} parent=0 // pred_fallthru
    _
  %v15 = vld [vmem:[%s1] sm:$0xf]
  %v16 = vld [vmem:[%s1 + $0x4] sm:$0xf]
  %v17 = vld [vmem:[%s1 + $0x8] sm:$0xf]
  %v18 = vld [vmem:[%s1 + $0xc] sm:$0xf]
  %v19 = vld [vmem:[%s1 + $0x10] sm:$0xf]
  %v20 = vld [vmem:[%s1 + $0x14] sm:$0xf]
  %v21 = vld [vmem:[%s1 + $0x18] sm:$0xf]
  %v22 = vld [vmem:[%s1 + $0x1c] sm:$0xf]
  %v23 = vld [vmem:[%s1 + $0x20] sm:$0xf]
  %v24 = vld [vmem:[%s1 + $0x24] sm:$0xf]
  %v25 = vld [vmem:[%s1 + $0x28] sm:$0xf]
  %v26 = vld [vmem:[%s1 + $0x2c] sm:$0x3]
  %v27 = vld [vmem:[%s2] sm:$0xf]
  %v28 = vld [vmem:[%s2 + $0x4] sm:$0xf]
  %v29 = vld [vmem:[%s2 + $0x8] sm:$0xf]
  %v30 = vld [vmem:[%s2 + $0xc] sm:$0xf]
  %v31 = vld [vmem:[%s2 + $0x10] sm:$0xf]
  %v32 = vld [vmem:[%s2 + $0x14] sm:$0xf]
  %v33 = vld [vmem:[%s2 + $0x18] sm:$0xf]
  %v34 = vld [vmem:[%s2 + $0x1c] sm:$0xf]
  %v35 = vld [vmem:[%s2 + $0x20] sm:$0xf]
  %v36 = vld [vmem:[%s2 + $0x24] sm:$0xf]
  %v37 = vld [vmem:[%s2 + $0x28] sm:$0xf]
  %v38 = vld [vmem:[%s2 + $0x2c] sm:$0x3]
  %v39 = vlaneseq
  %v40 = vand.u32 %v39, 127
  %v41 = vld [vmem:[%s0] sm:$0xff]
  %v42 = vld [vmem:[%s0 + $0x8] sm:$0xff]
  %v43 = vld [vmem:[%s0 + $0x10] sm:$0xff]
  %v44 = vld [vmem:[%s0 + $0x18] sm:$0xff]
  %v45 = vld [vmem:[%s0 + $0x20] sm:$0xff]
  %v46 = vld [vmem:[%s0 + $0x28] sm:$0xff]
  %v47 = vld [vmem:[%s0 + $0x30] sm:$0xff]
  %v48 = vld [vmem:[%s0 + $0x38] sm:$0xff]
  %v49 = vld [vmem:[%s0 + $0x40] sm:$0xff]
  %v50 = vld [vmem:[%s0 + $0x48] sm:$0xff]
  %v51 = vld [vmem:[%s0 + $0x50] sm:$0xff]
  %v52 = vld [vmem:[%s0 + $0x58] sm:$0xff]
  %v53 = vld [vmem:[%s0 + $0x60] sm:$0xff]
  %v54 = vld [vmem:[%s0 + $0x68] sm:$0xff]
  %v55 = vld [vmem:[%s0 + $0x70] sm:$0xff]
  %v56 = vld [vmem:[%s0 + $0x78] sm:$0xff]
  %v57 = vcvt.f32.s32.to.zero.pseudo %v41
  %v58 = vcvt.f32.s32.to.zero.pseudo %v42
  %v59 = vcvt.f32.s32.to.zero.pseudo %v43
  %v60 = vcvt.f32.s32.to.zero.pseudo %v44
  %v61 = vcvt.f32.s32.to.zero.pseudo %v45
  %v62 = vcvt.f32.s32.to.zero.pseudo %v46
  %v63 = vcvt.f32.s32.to.zero.pseudo %v47
  %v64 = vcvt.f32.s32.to.zero.pseudo %v48
  %v65 = vcvt.f32.s32.to.zero.pseudo %v49
  %v66 = vcvt.f32.s32.to.zero.pseudo %v50
  %v67 = vcvt.f32.s32.to.zero.pseudo %v51
  %v68 = vcvt.f32.s32.to.zero.pseudo %v52
  %v69 = vcvt.f32.s32.to.zero.pseudo %v53
  %v70 = vcvt.f32.s32.to.zero.pseudo %v54
  %v71 = vcvt.f32.s32.to.zero.pseudo %v55
  %v72 = vcvt.f32.s32.to.zero.pseudo %v56
  %73 = vset.pattern.permute.xlu0 9
  %74 = vperm.xlu0 %73, %v57
  %v75 = vpop.permute.xlu0 %74
  %76 = vset.pattern.permute.xlu0 9
  %77 = vperm.xlu0 %76, %v58
  %v78 = vpop.permute.xlu0 %77
  %79 = vset.pattern.permute.xlu0 9
  %80 = vperm.xlu0 %79, %v59
  %v81 = vpop.permute.xlu0 %80
  %82 = vset.pattern.permute.xlu0 9
  %83 = vperm.xlu0 %82, %v60
  %v84 = vpop.permute.xlu0 %83
  %85 = vset.pattern.permute.xlu0 9
  %86 = vperm.xlu0 %85, %v61
  %v87 = vpop.permute.xlu0 %86
  %88 = vset.pattern.permute.xlu0 9
  %89 = vperm.xlu0 %88, %v62
  %v90 = vpop.permute.xlu0 %89
  %91 = vset.pattern.permute.xlu0 9
  %92 = vperm.xlu0 %91, %v63
  %v93 = vpop.permute.xlu0 %92
  %94 = vset.pattern.permute.xlu0 9
  %95 = vperm.xlu0 %94, %v64
  %v96 = vpop.permute.xlu0 %95
  %97 = vset.pattern.permute.xlu0 9
  %98 = vperm.xlu0 %97, %v65
  %v99 = vpop.permute.xlu0 %98
  %100 = vset.pattern.permute.xlu0 9
  %101 = vperm.xlu0 %100, %v66
  %v102 = vpop.permute.xlu0 %101
  %103 = vset.pattern.permute.xlu0 9
  %104 = vperm.xlu0 %103, %v67
  %v105 = vpop.permute.xlu0 %104
  %106 = vset.pattern.permute.xlu0 9
  %107 = vperm.xlu0 %106, %v68
  %v108 = vpop.permute.xlu0 %107
  %109 = vset.pattern.permute.xlu0 9
  %110 = vperm.xlu0 %109, %v69
  %v111 = vpop.permute.xlu0 %110
  %112 = vset.pattern.permute.xlu0 9
  %113 = vperm.xlu0 %112, %v70
  %v114 = vpop.permute.xlu0 %113
  %115 = vset.pattern.permute.xlu0 9
  %116 = vperm.xlu0 %115, %v71
  %v117 = vpop.permute.xlu0 %116
  %118 = vset.pattern.permute.xlu0 9
  %119 = vperm.xlu0 %118, %v72
  %v120 = vpop.permute.xlu0 %119
  %vm121 = vcmp.eq.s32.totalorder %v40, %v75
  %vm122 = vcmp.eq.s32.totalorder %v40, %v78
  %vm123 = vcmp.eq.s32.totalorder %v40, %v81
  %vm124 = vcmp.eq.s32.totalorder %v40, %v84
  %vm125 = vcmp.eq.s32.totalorder %v40, %v87
  %vm126 = vcmp.eq.s32.totalorder %v40, %v90
  %vm127 = vcmp.eq.s32.totalorder %v40, %v93
  %vm128 = vcmp.eq.s32.totalorder %v40, %v96
  %vm129 = vcmp.eq.s32.totalorder %v40, %v99
  %vm130 = vcmp.eq.s32.totalorder %v40, %v102
  %vm131 = vcmp.eq.s32.totalorder %v40, %v105
  %vm132 = vcmp.eq.s32.totalorder %v40, %v108
  %vm133 = vcmp.eq.s32.totalorder %v40, %v111
  %vm134 = vcmp.eq.s32.totalorder %v40, %v114
  %vm135 = vcmp.eq.s32.totalorder %v40, %v117
  %vm136 = vcmp.eq.s32.totalorder %v40, %v120
  %137 = vset.pattern.permute.xlu0 10
  %138 = vperm.xlu0 %137, %v57
  %v139 = vpop.permute.xlu0 %138
  %140 = vset.pattern.permute.xlu0 10
  %141 = vperm.xlu0 %140, %v58
  %v142 = vpop.permute.xlu0 %141
  %143 = vset.pattern.permute.xlu0 10
  %144 = vperm.xlu0 %143, %v59
  %v145 = vpop.permute.xlu0 %144
  %146 = vset.pattern.permute.xlu0 10
  %147 = vperm.xlu0 %146, %v60
  %v148 = vpop.permute.xlu0 %147
  %149 = vset.pattern.permute.xlu0 10
  %150 = vperm.xlu0 %149, %v61
  %v151 = vpop.permute.xlu0 %150
  %152 = vset.pattern.permute.xlu0 10
  %153 = vperm.xlu0 %152, %v62
  %v154 = vpop.permute.xlu0 %153
  %155 = vset.pattern.permute.xlu0 10
  %156 = vperm.xlu0 %155, %v63
  %v157 = vpop.permute.xlu0 %156
  %158 = vset.pattern.permute.xlu0 10
  %159 = vperm.xlu0 %158, %v64
  %v160 = vpop.permute.xlu0 %159
  %161 = vset.pattern.permute.xlu0 10
  %162 = vperm.xlu0 %161, %v65
  %v163 = vpop.permute.xlu0 %162
  %164 = vset.pattern.permute.xlu0 10
  %165 = vperm.xlu0 %164, %v66
  %v166 = vpop.permute.xlu0 %165
  %167 = vset.pattern.permute.xlu0 10
  %168 = vperm.xlu0 %167, %v67
  %v169 = vpop.permute.xlu0 %168
  %170 = vset.pattern.permute.xlu0 10
  %171 = vperm.xlu0 %170, %v68
  %v172 = vpop.permute.xlu0 %171
  %173 = vset.pattern.permute.xlu0 10
  %174 = vperm.xlu0 %173, %v69
  %v175 = vpop.permute.xlu0 %174
  %176 = vset.pattern.permute.xlu0 10
  %177 = vperm.xlu0 %176, %v70
  %v178 = vpop.permute.xlu0 %177
  %179 = vset.pattern.permute.xlu0 10
  %180 = vperm.xlu0 %179, %v71
  %v181 = vpop.permute.xlu0 %180
  %182 = vset.pattern.permute.xlu0 10
  %183 = vperm.xlu0 %182, %v72
  %v184 = vpop.permute.xlu0 %183
  %vm185 = vcmp.eq.s32.totalorder %v40, %v139
  %vm186 = vcmp.eq.s32.totalorder %v40, %v142
  %vm187 = vcmp.eq.s32.totalorder %v40, %v145
  %vm188 = vcmp.eq.s32.totalorder %v40, %v148
  %vm189 = vcmp.eq.s32.totalorder %v40, %v151
  %vm190 = vcmp.eq.s32.totalorder %v40, %v154
  %vm191 = vcmp.eq.s32.totalorder %v40, %v157
  %vm192 = vcmp.eq.s32.totalorder %v40, %v160
  %vm193 = vcmp.eq.s32.totalorder %v40, %v163
  %vm194 = vcmp.eq.s32.totalorder %v40, %v166
  %vm195 = vcmp.eq.s32.totalorder %v40, %v169
  %vm196 = vcmp.eq.s32.totalorder %v40, %v172
  %vm197 = vcmp.eq.s32.totalorder %v40, %v175
  %vm198 = vcmp.eq.s32.totalorder %v40, %v178
  %vm199 = vcmp.eq.s32.totalorder %v40, %v181
  %vm200 = vcmp.eq.s32.totalorder %v40, %v184
  %vm201 = vmor %vm121, %vm185
  %vm202 = vmor %vm122, %vm186
  %vm203 = vmor %vm123, %vm187
  %vm204 = vmor %vm124, %vm188
  %vm205 = vmor %vm125, %vm189
  %vm206 = vmor %vm126, %vm190
  %vm207 = vmor %vm127, %vm191
  %vm208 = vmor %vm128, %vm192
  %vm209 = vmor %vm129, %vm193
  %vm210 = vmor %vm130, %vm194
  %vm211 = vmor %vm131, %vm195
  %vm212 = vmor %vm132, %vm196
  %vm213 = vmor %vm133, %vm197
  %vm214 = vmor %vm134, %vm198
  %vm215 = vmor %vm135, %vm199
  %vm216 = vmor %vm136, %vm200
  %v217 = vsel %vm201, 1, 0
  %v218 = vsel %vm202, 1, 0
  %v219 = vsel %vm203, 1, 0
  %v220 = vsel %vm204, 1, 0
  %v221 = vsel %vm205, 1, 0
  %v222 = vsel %vm206, 1, 0
  %v223 = vsel %vm207, 1, 0
  %v224 = vsel %vm208, 1, 0
  %v225 = vsel %vm209, 1, 0
  %v226 = vsel %vm210, 1, 0
  %v227 = vsel %vm211, 1, 0
  %v228 = vsel %vm212, 1, 0
  %v229 = vsel %vm213, 1, 0
  %v230 = vsel %vm214, 1, 0
  %v231 = vsel %vm215, 1, 0
  %v232 = vsel %vm216, 1, 0
  %v233 = vcvt.s32.f32 %v217
  %v234 = vcvt.s32.f32 %v218
  %v235 = vcvt.s32.f32 %v219
  %v236 = vcvt.s32.f32 %v220
  %v237 = vcvt.s32.f32 %v221
  %v238 = vcvt.s32.f32 %v222
  %v239 = vcvt.s32.f32 %v223
  %v240 = vcvt.s32.f32 %v224
  %v241 = vcvt.s32.f32 %v225
  %v242 = vcvt.s32.f32 %v226
  %v243 = vcvt.s32.f32 %v227
  %v244 = vcvt.s32.f32 %v228
  %v245 = vcvt.s32.f32 %v229
  %v246 = vcvt.s32.f32 %v230
  %v247 = vcvt.s32.f32 %v231
  %v248 = vcvt.s32.f32 %v232
  %265 = vrot.lane.b32.xlu0 %v233, 16
  %v266 = vpop.permute.xlu0 %265
  %267 = vrot.lane.b32.xlu0 %v234, 16
  %v268 = vpop.permute.xlu0 %267
  %269 = vrot.lane.b32.xlu0 %v235, 16
  %v270 = vpop.permute.xlu0 %269
  %271 = vrot.lane.b32.xlu0 %v236, 16
  %v272 = vpop.permute.xlu0 %271
  %273 = vrot.lane.b32.xlu0 %v237, 16
  %v274 = vpop.permute.xlu0 %273
  %275 = vrot.lane.b32.xlu0 %v238, 16
  %v276 = vpop.permute.xlu0 %275
  %277 = vrot.lane.b32.xlu0 %v239, 16
  %v278 = vpop.permute.xlu0 %277
  %279 = vrot.lane.b32.xlu0 %v240, 16
  %v280 = vpop.permute.xlu0 %279
  %281 = vrot.lane.b32.xlu0 %v241, 16
  %v282 = vpop.permute.xlu0 %281
  %283 = vrot.lane.b32.xlu0 %v242, 16
  %v284 = vpop.permute.xlu0 %283
  %285 = vrot.lane.b32.xlu0 %v243, 16
  %v286 = vpop.permute.xlu0 %285
  %287 = vrot.lane.b32.xlu0 %v244, 16
  %v288 = vpop.permute.xlu0 %287
  %289 = vrot.lane.b32.xlu0 %v245, 16
  %v290 = vpop.permute.xlu0 %289
  %291 = vrot.lane.b32.xlu0 %v246, 16
  %v292 = vpop.permute.xlu0 %291
  %293 = vrot.lane.b32.xlu0 %v247, 16
  %v294 = vpop.permute.xlu0 %293
  %295 = vrot.lane.b32.xlu0 %v248, 16
  %v296 = vpop.permute.xlu0 %295
  %vm313 = vcmask 130048
  %v314 = vsel %vm313, %v41, %v266
  %v315 = vsel %vm313, %v42, %v268
  %v316 = vsel %vm313, %v43, %v270
  %v317 = vsel %vm313, %v44, %v272
  %v318 = vsel %vm313, %v45, %v274
  %v319 = vsel %vm313, %v46, %v276
  %v320 = vsel %vm313, %v47, %v278
  %v321 = vsel %vm313, %v48, %v280
  %v322 = vsel %vm313, %v49, %v282
  %v323 = vsel %vm313, %v50, %v284
  %v324 = vsel %vm313, %v51, %v286
  %v325 = vsel %vm313, %v52, %v288
  %v326 = vsel %vm313, %v53, %v290
  %v327 = vsel %vm313, %v54, %v292
  %v328 = vsel %vm313, %v55, %v294
  %v329 = vsel %vm313, %v56, %v296
  %v330 = vpack.c.bf16 %v315, %v314
  %v331 = vpack.c.bf16 %v317, %v316
  %v332 = vpack.c.bf16 %v319, %v318
  %v333 = vpack.c.bf16 %v321, %v320
  %v334 = vpack.c.bf16 %v323, %v322
  %v335 = vpack.c.bf16 %v325, %v324
  %v336 = vpack.c.bf16 %v327, %v326
  %v337 = vpack.c.bf16 %v329, %v328
  %v350 = vunpack.c.l.b16 %v27
  %v351 = vunpack.c.l.b16 %v28
  %v352 = vunpack.c.l.b16 %v29
  %v353 = vunpack.c.l.b16 %v30
  %v354 = vunpack.c.l.b16 %v31
  %v355 = vunpack.c.l.b16 %v32
  %v356 = vunpack.c.l.b16 %v33
  %v357 = vunpack.c.l.b16 %v34
  %v358 = vunpack.c.l.b16 %v35
  %v359 = vunpack.c.l.b16 %v36
  %v360 = vunpack.c.l.b16 %v37
  %v361 = vunpack.c.l.b16 %v38
  %v362 = vpack.c.b16 %v351, %v350
  %v363 = vpack.c.b16 %v353, %v352
  %v364 = vpack.c.b16 %v355, %v354
  %v365 = vpack.c.b16 %v357, %v356
  %v366 = vpack.c.b16 %v359, %v358
  %v367 = vpack.c.b16 %v361, %v360
  %vm373 = vcmask 752640
  %v375 = vsel %vm373, %v330, 0
  %v378 = vsel %vm373, %v331, 0
  %v381 = vsel %vm373, %v332, 0
  %v384 = vsel %vm373, %v333, 0
  %v387 = vsel %vm373, %v334, 0
  %v390 = vsel %vm373, %v335, 0
  %v393 = vsel %vm373, %v336, 0
  %v396 = vsel %vm373, %v337, 0
  %vm398 = vcmask 1045504
  %v400 = vsel %vm398, %v367, 0
  %402 = vmatprep.subr.bf16.mxu0 0
  %403 = vmatpush1.bf16.msra.mxu0 %v362
  %404 = vmatprep.subr.bf16.mxu0 0
  %405 = vmatpush1.bf16.msra.mxu0 %v363
  %406 = vmatprep.subr.bf16.mxu0 0
  %407 = vmatpush1.bf16.msra.mxu0 %v364
  %408 = vmatprep.subr.bf16.mxu0 0
  %409 = vmatpush1.bf16.msra.mxu0 %v365
  %410 = vmatprep.subr.bf16.mxu0 0
  %411 = vmatpush1.bf16.msra.mxu0 %v366
  %412 = vmatprep.subr.bf16.mxu0 0
  %413 = vmatpush1.bf16.msra.mxu0 %v400
  %414 = vmatprep.subr.bf16.mxu0 0
  %415 = vmatpush1.bf16.msra.mxu0 0
  %416 = vmatprep.subr.bf16.mxu0 0
  %417 = vmatpush1.bf16.msra.mxu0 0
  %418 = vmatprep.subr.bf16.mxu0 0
  %419 = vmatpush1.bf16.msra.mxu0 0
  %420 = vmatprep.subr.bf16.mxu0 0
  %421 = vmatpush1.bf16.msra.mxu0 0
  %422 = vmatprep.subr.bf16.mxu0 0
  %423 = vmatpush1.bf16.msra.mxu0 0
  %424 = vmatprep.subr.bf16.mxu0 0
  %425 = vmatpush1.bf16.msra.mxu0 0
  %426 = vmatprep.subr.bf16.mxu0 0
  %427 = vmatpush1.bf16.msra.mxu0 0
  %428 = vmatprep.subr.bf16.mxu0 0
  %429 = vmatpush1.bf16.msra.mxu0 0
  %430 = vmatprep.subr.bf16.mxu0 0
  %431 = vmatpush1.bf16.msra.mxu0 0
  %432 = vmatprep.subr.bf16.mxu0 0
  %433 = vmatpush1.bf16.msra.mxu0 0
  %434 = vmatprep.mubr.bf16.mxu0 0
  %435 = vmatmul.mubr.bf16.gmra.mrb[0].mxu0 %v375
  %v436 = vpop.f32.mrb[0].mxu0
  %v437 = vadd.f32 0.0, %v436
  %v438 = vpop.f32.mrb[0].mxu0
  %v439 = vpop.f32.mrb[0].mxu0
  %v440 = vadd.f32 0.0, %v439
  %v441 = vpop.f32.mrb[0].mxu0
  %442 = vmatprep.mubr.bf16.mxu0 0
  %443 = vmatmul.mubr.bf16.gmra.mrb[0].mxu0 %v378
  %v444 = vpop.f32.mrb[0].mxu0
  %v445 = vadd.f32 0.0, %v444
  %v446 = vpop.f32.mrb[0].mxu0
  %v447 = vpop.f32.mrb[0].mxu0
  %v448 = vadd.f32 0.0, %v447
  %v449 = vpop.f32.mrb[0].mxu0
  %450 = vmatprep.mubr.bf16.mxu0 0
  %451 = vmatmul.mubr.bf16.gmra.mrb[0].mxu0 %v381
  %v452 = vpop.f32.mrb[0].mxu0
  %v453 = vadd.f32 0.0, %v452
  %v454 = vpop.f32.mrb[0].mxu0
  %v455 = vpop.f32.mrb[0].mxu0
  %v456 = vadd.f32 0.0, %v455
  %v457 = vpop.f32.mrb[0].mxu0
  %458 = vmatprep.mubr.bf16.mxu0 0
  %459 = vmatmul.mubr.bf16.gmra.mrb[0].mxu0 %v384
  %v460 = vpop.f32.mrb[0].mxu0
  %v461 = vadd.f32 0.0, %v460
  %v462 = vpop.f32.mrb[0].mxu0
  %v463 = vpop.f32.mrb[0].mxu0
  %v464 = vadd.f32 0.0, %v463
  %v465 = vpop.f32.mrb[0].mxu0
  %466 = vmatprep.mubr.bf16.mxu0 0
  %467 = vmatmul.mubr.bf16.gmra.mrb[0].mxu0 %v387
  %v468 = vpop.f32.mrb[0].mxu0
  %v469 = vadd.f32 0.0, %v468
  %v470 = vpop.f32.mrb[0].mxu0
  %v471 = vpop.f32.mrb[0].mxu0
  %v472 = vadd.f32 0.0, %v471
  %v473 = vpop.f32.mrb[0].mxu0
  %474 = vmatprep.mubr.bf16.mxu0 0
  %475 = vmatmul.mubr.bf16.gmra.mrb[0].mxu0 %v390
  %v476 = vpop.f32.mrb[0].mxu0
  %v477 = vadd.f32 0.0, %v476
  %v478 = vpop.f32.mrb[0].mxu0
  %v479 = vpop.f32.mrb[0].mxu0
  %v480 = vadd.f32 0.0, %v479
  %v481 = vpop.f32.mrb[0].mxu0
  %482 = vmatprep.mubr.bf16.mxu0 0
  %483 = vmatmul.mubr.bf16.gmra.mrb[0].mxu0 %v393
  %v484 = vpop.f32.mrb[0].mxu0
  %v485 = vadd.f32 0.0, %v484
  %v486 = vpop.f32.mrb[0].mxu0
  %v487 = vpop.f32.mrb[0].mxu0
  %v488 = vadd.f32 0.0, %v487
  %v489 = vpop.f32.mrb[0].mxu0
  %490 = vmatprep.mubr.bf16.mxu0 0
  %491 = vmatmul.mubr.bf16.gmra.mrb[0].mxu0 %v396
  %v492 = vpop.f32.mrb[0].mxu0
  %v493 = vadd.f32 0.0, %v492
  %v494 = vpop.f32.mrb[0].mxu0
  %v495 = vpop.f32.mrb[0].mxu0
  %v496 = vadd.f32 0.0, %v495
  %v497 = vpop.f32.mrb[0].mxu0
  %498 = vdwg.mxu0
  %v511 = vunpack.c.l.b16 %v15
  %v512 = vunpack.c.l.b16 %v16
  %v513 = vunpack.c.l.b16 %v17
  %v514 = vunpack.c.l.b16 %v18
  %v515 = vunpack.c.l.b16 %v19
  %v516 = vunpack.c.l.b16 %v20
  %v517 = vunpack.c.l.b16 %v21
  %v518 = vunpack.c.l.b16 %v22
  %v519 = vunpack.c.l.b16 %v23
  %v520 = vunpack.c.l.b16 %v24
  %v521 = vunpack.c.l.b16 %v25
  %v522 = vunpack.c.l.b16 %v26
  %v523 = vpack.c.b16 %v512, %v511
  %v524 = vpack.c.b16 %v514, %v513
  %v525 = vpack.c.b16 %v516, %v515
  %v526 = vpack.c.b16 %v518, %v517
  %v527 = vpack.c.b16 %v520, %v519
  %v528 = vpack.c.b16 %v522, %v521
  %v535 = vsel %vm398, %v528, 0
  %537 = vmatprep.subr.bf16.mxu0 0
  %538 = vmatpush1.bf16.msra.mxu0 %v523
  %539 = vmatprep.subr.bf16.mxu0 0
  %540 = vmatpush1.bf16.msra.mxu0 %v524
  %541 = vmatprep.subr.bf16.mxu0 0
  %542 = vmatpush1.bf16.msra.mxu0 %v525
  %543 = vmatprep.subr.bf16.mxu0 0
  %544 = vmatpush1.bf16.msra.mxu0 %v526
  %545 = vmatprep.subr.bf16.mxu0 0
  %546 = vmatpush1.bf16.msra.mxu0 %v527
  %547 = vmatprep.subr.bf16.mxu0 0
  %548 = vmatpush1.bf16.msra.mxu0 %v535
  %549 = vmatprep.subr.bf16.mxu0 0
  %550 = vmatpush1.bf16.msra.mxu0 0
  %551 = vmatprep.subr.bf16.mxu0 0
  %552 = vmatpush1.bf16.msra.mxu0 0
  %553 = vmatprep.subr.bf16.mxu0 0
  %554 = vmatpush1.bf16.msra.mxu0 0
  %555 = vmatprep.subr.bf16.mxu0 0
  %556 = vmatpush1.bf16.msra.mxu0 0
  %557 = vmatprep.subr.bf16.mxu0 0
  %558 = vmatpush1.bf16.msra.mxu0 0
  %559 = vmatprep.subr.bf16.mxu0 0
  %560 = vmatpush1.bf16.msra.mxu0 0
  %561 = vmatprep.subr.bf16.mxu0 0
  %562 = vmatpush1.bf16.msra.mxu0 0
  %563 = vmatprep.subr.bf16.mxu0 0
  %564 = vmatpush1.bf16.msra.mxu0 0
  %565 = vmatprep.subr.bf16.mxu0 0
  %566 = vmatpush1.bf16.msra.mxu0 0
  %567 = vmatprep.subr.bf16.mxu0 0
  %568 = vmatpush1.bf16.msra.mxu0 0
  %569 = vmatprep.mubr.bf16.mxu0 0
  %570 = vmatmul.mubr.bf16.gmra.mrb[0].mxu0 %v375
  %v571 = vpop.f32.mrb[0].mxu0
  %v572 = vadd.f32 %v437, %v571
  %v573 = vpop.f32.mrb[0].mxu0
  %v574 = vpop.f32.mrb[0].mxu0
  %v575 = vadd.f32 %v440, %v574
  %v576 = vpop.f32.mrb[0].mxu0
  %577 = vmatprep.mubr.bf16.mxu0 0
  %578 = vmatmul.mubr.bf16.gmra.mrb[0].mxu0 %v378
  %v579 = vpop.f32.mrb[0].mxu0
  %v580 = vadd.f32 %v445, %v579
  %v581 = vpop.f32.mrb[0].mxu0
  %v582 = vpop.f32.mrb[0].mxu0
  %v583 = vadd.f32 %v448, %v582
  %v584 = vpop.f32.mrb[0].mxu0
  %585 = vmatprep.mubr.bf16.mxu0 0
  %586 = vmatmul.mubr.bf16.gmra.mrb[0].mxu0 %v381
  %v587 = vpop.f32.mrb[0].mxu0
  %v588 = vadd.f32 %v453, %v587
  %v589 = vpop.f32.mrb[0].mxu0
  %v590 = vpop.f32.mrb[0].mxu0
  %v591 = vadd.f32 %v456, %v590
  %v592 = vpop.f32.mrb[0].mxu0
  %593 = vmatprep.mubr.bf16.mxu0 0
  %594 = vmatmul.mubr.bf16.gmra.mrb[0].mxu0 %v384
  %v595 = vpop.f32.mrb[0].mxu0
  %v596 = vadd.f32 %v461, %v595
  %v597 = vpop.f32.mrb[0].mxu0
  %v598 = vpop.f32.mrb[0].mxu0
  %v599 = vadd.f32 %v464, %v598
  %v600 = vpop.f32.mrb[0].mxu0
  %601 = vmatprep.mubr.bf16.mxu0 0
  %602 = vmatmul.mubr.bf16.gmra.mrb[0].mxu0 %v387
  %v603 = vpop.f32.mrb[0].mxu0
  %v604 = vadd.f32 %v469, %v603
  %v605 = vpop.f32.mrb[0].mxu0
  %v606 = vpop.f32.mrb[0].mxu0
  %v607 = vadd.f32 %v472, %v606
  %v608 = vpop.f32.mrb[0].mxu0
  %609 = vmatprep.mubr.bf16.mxu0 0
  %610 = vmatmul.mubr.bf16.gmra.mrb[0].mxu0 %v390
  %v611 = vpop.f32.mrb[0].mxu0
  %v612 = vadd.f32 %v477, %v611
  %v613 = vpop.f32.mrb[0].mxu0
  %v614 = vpop.f32.mrb[0].mxu0
  %v615 = vadd.f32 %v480, %v614
  %v616 = vpop.f32.mrb[0].mxu0
  %617 = vmatprep.mubr.bf16.mxu0 0
  %618 = vmatmul.mubr.bf16.gmra.mrb[0].mxu0 %v393
  %v619 = vpop.f32.mrb[0].mxu0
  %v620 = vadd.f32 %v485, %v619
  %v621 = vpop.f32.mrb[0].mxu0
  %v622 = vpop.f32.mrb[0].mxu0
  %v623 = vadd.f32 %v488, %v622
  %v624 = vpop.f32.mrb[0].mxu0
  %625 = vmatprep.mubr.bf16.mxu0 0
  %626 = vmatmul.mubr.bf16.gmra.mrb[0].mxu0 %v396
  %v627 = vpop.f32.mrb[0].mxu0
  %v628 = vadd.f32 %v493, %v627
  %v629 = vpop.f32.mrb[0].mxu0
  %v630 = vpop.f32.mrb[0].mxu0
  %v631 = vadd.f32 %v496, %v630
  %v632 = vpop.f32.mrb[0].mxu0
  %633 = vdwg.mxu0
  %vm634 = vcmask 261120
  %635 = vst.msk [vmem:[%s3] sm:$0xff] %vm634, %v572
  %636 = vst.msk [vmem:[%s3 + $0x8] sm:$0xff] %vm634, %v575
  %637 = vst.msk [vmem:[%s3 + $0x10] sm:$0xff] %vm634, %v580
  %638 = vst.msk [vmem:[%s3 + $0x18] sm:$0xff] %vm634, %v583
  %639 = vst.msk [vmem:[%s3 + $0x20] sm:$0xff] %vm634, %v588
  %640 = vst.msk [vmem:[%s3 + $0x28] sm:$0xff] %vm634, %v591
  %641 = vst.msk [vmem:[%s3 + $0x30] sm:$0xff] %vm634, %v596
  %642 = vst.msk [vmem:[%s3 + $0x38] sm:$0xff] %vm634, %v599
  %643 = vst.msk [vmem:[%s3 + $0x40] sm:$0xff] %vm634, %v604
  %644 = vst.msk [vmem:[%s3 + $0x48] sm:$0xff] %vm634, %v607
  %645 = vst.msk [vmem:[%s3 + $0x50] sm:$0xff] %vm634, %v612
  %646 = vst.msk [vmem:[%s3 + $0x58] sm:$0xff] %vm634, %v615
  %647 = vst.msk [vmem:[%s3 + $0x60] sm:$0xff] %vm634, %v620
  %648 = vst.msk [vmem:[%s3 + $0x68] sm:$0xff] %vm634, %v623
  %649 = vst.msk [vmem:[%s3 + $0x70] sm:$0xff] %vm634, %v628
  %650 = vst.msk [vmem:[%s3 + $0x78] sm:$0xff] %vm634, %v631
  // Predicated region
  $region14: #{tpu_custom_call.1} parent=0 // pred_check
    _
  $region15: #{tpu_custom_call.1} parent=0 // pred_check_branch
    %652 = sbr.rel (0) target = $region17
  $region16: #{tpu_custom_call.1} parent=0 // pred_region
    _
  $region17: #{tpu_custom_call.1} parent=0 // pred_fallthru
    _
  // Predicated region
  $region18: #{tpu_custom_call.1} parent=0 // pred_check
    _
  $region19: #{tpu_custom_call.1} parent=0 // pred_check_branch
    %654 = sbr.rel (0) target = $region21
  $region20: #{tpu_custom_call.1} parent=0 // pred_region
    _
  $region21: #{tpu_custom_call.1} parent=0 // pred_fallthru
    _

</llo_original>
